<compile_context>
chip_gen: v6e
topology: v6e:2x2x1
jax: 0.10.0
libtpu: 0.0.40
codegen_flags: <defaults>
</compile_context>

<pallas_src>
import functools

import jax
import jax.numpy as jnp
from jax.experimental import pallas as pl
from jax.experimental.pallas import tpu as pltpu


# ----------------------------- helpers ---------------------------------------

def _round_up(x: int, m: int) -> int:
    return ((x + m - 1) // m) * m


def _vmem_capacity_bytes() -> int:
    try:
        return int(pltpu.get_tpu_info().vmem_capacity_bytes)
    except Exception:
        return 64 * 1024 * 1024          # conservative (v7x per-TC VMEM)


def _choose_tile_n(n: int, c: int, itemsize: int, per_buffer_budget: int) -> int:
    """Largest batch tile (multiple of 8) whose logits block fits the byte
    budget; capped at a few thousand rows so small-C cases still pipeline."""
    bytes_per_row = max(1, c * itemsize)
    rows = per_buffer_budget // bytes_per_row
    rows = min(rows, 8192)
    rows = max(8, (rows // 8) * 8)
    rows = min(rows, _round_up(n, 8))     # never larger than the (rounded) batch
    return max(8, rows)


def _build_q_inputs(q_params):
    """Concatenate all AdaptiveGroupNorm Q params lane-dense.

    Each Q_m (G_m, D_m) is padded to (Gpad, round_up(D_m, 128)) with -1e30
    (finite, so exp underflows to 0 and 0 * (-1e30) == 0; -inf would NaN) and
    concatenated along the lane axis.  The weight vector holds 1/D_m for each
    module's valid columns and 0 for padding, so sum(H * w) equals
    sum_m mean_d H_m[d].
    """
    if not q_params:
        return (jnp.zeros((8, 128), jnp.float32),
                jnp.zeros((1, 128), jnp.float32))
    gpad = _round_up(max(max(int(q.shape[0]) for q in q_params), 8), 8)
    q_blocks, w_blocks = [], []
    for q in q_params:
        g, d = int(q.shape[0]), int(q.shape[1])
        dpad = _round_up(d, 128)
        q_blocks.append(jnp.pad(q.astype(jnp.float32),
                                ((0, gpad - g), (0, dpad - d)),
                                constant_values=-1e30))
        w_blocks.append(jnp.concatenate(
            [jnp.full((1, d), 1.0 / d, jnp.float32),
             jnp.zeros((1, dpad - d), jnp.float32)], axis=1))
    return jnp.concatenate(q_blocks, axis=1), jnp.concatenate(w_blocks, axis=1)


# ----------------------------- kernel -----------------------------------------

def _fused_loss_kernel(logits_ref, targets_ref, qcat_ref, qw_ref, out_ref, *,
                       n_valid, tile_n):
    """One batch tile of cross-entropy (+ the whole Q-entropy regularizer on
    grid step 0).  Emits a lane-dense (8, 128) block per step:
      [0, 0] = sum of per-row CE for this tile
      [0, 1] = sum over modules of mean-channel entropy (block 0 only, else 0)
    """
    i = pl.program_id(0)

    logits = logits_ref[...].astype(jnp.float32)                 # (TILE_N, C)
    tn, c = logits.shape
    tgt = targets_ref[...]                                       # (TILE_N, 1) i32

    # Rows past the true batch size: the unpadded tail block reads undefined
    # data, so force those rows to a large finite negative BEFORE exp.
    row = jax.lax.broadcasted_iota(jnp.int32, (tn, 1), 0) + i * tile_n
    valid = row < n_valid                                        # (TILE_N, 1)
    logits = jnp.where(valid, logits, jnp.float32(-1e30))

    # Stable log-sum-exp per row; the row max cancels in (lse - picked) so we
    # gather the target logit from z directly.
    m = jnp.max(logits, axis=-1, keepdims=True)                  # (TILE_N, 1)
    z = logits - m
    sum_e = jnp.sum(jnp.exp(z), axis=-1, keepdims=True)          # (TILE_N, 1)

    col = jax.lax.broadcasted_iota(jnp.int32, (1, c), 1)         # (1, C)
    picked_z = jnp.sum(jnp.where(col == tgt, z, 0.0), axis=-1, keepdims=True)

    per_row = jnp.log(sum_e) - picked_z                          # = lse - target logit
    per_row = jnp.where(valid, per_row, 0.0)
    ce_part = jnp.sum(per_row)

    r8 = jax.lax.broadcasted_iota(jnp.int32, (8, 128), 0)
    c128 = jax.lax.broadcasted_iota(jnp.int32, (8, 128), 1)
    ce_blk = jnp.where((r8 == 0) & (c128 == 0), ce_part, jnp.float32(0.0))

    @pl.when(i == 0)
    def _():
        # Entire AdaptiveGroupNorm regularizer, lane-dense, computed once.
        q = qcat_ref[...].astype(jnp.float32)                    # (Gpad, Dtot)
        qm = jnp.max(q, axis=0, keepdims=True)
        qe = jnp.exp(q - qm)                                     # pad rows -> 0
        p = qe / jnp.sum(qe, axis=0, keepdims=True)
        h = -jnp.sum(p * jnp.log(p + 1e-8), axis=0, keepdims=True)  # (1, Dtot)
        reg = jnp.sum(h * qw_ref[...])
        out_ref[...] = jnp.where((r8 == 0) & (c128 == 1), reg, ce_blk)

    @pl.when(i != 0)
    def _():
        out_ref[...] = ce_blk


# ----------------------------- wrapper -----------------------------------------

def adaptive_group_norm_loss(logits, targets, q_params, lam=0.005):
    """Mirror of AdaptiveGroupNormLoss.forward.

    logits: (N, C), targets: (N,) int, q_params: list of Q parameters (one per
    AdaptiveGroupNorm module in the model).  Returns a scalar f32 loss.
    """
    n, c = logits.shape
    itemsize = jnp.dtype(logits.dtype).itemsize

    cap = _vmem_capacity_bytes()
    small_vmem = cap <= (64 << 20)                 # v7x-class parts
    per_buffer = (8 << 20) if small_vmem else (16 << 20)

    qcat, qw = _build_q_inputs(q_params)
    q_bytes = int(qcat.size * 4 + qw.size * 4)

    tile_n = _choose_tile_n(n, c, itemsize, max(1 << 20, per_buffer - q_bytes))
    num_tiles = pl.cdiv(n, tile_n)

    # Targets as a tiny (TILE_N, 1) VMEM block: the broadcast-compare against
    # the class iota stays a pure VREG op.  (Lane padding is negligible here.)
    targets2d = targets.reshape(n, 1).astype(jnp.int32)

    tile_bytes = tile_n * c * itemsize
    tgt_bytes = tile_n * 128 * 4                   # lane-padded int32 tile
    vmem_needed = 2 * (tile_bytes + tgt_bytes) + q_bytes + 2 * (8 * 128 * 4) + (4 << 20)
    vmem_limit = int(min(max(vmem_needed, 16 << 20),
                         (32 << 20) if small_vmem else (64 << 20)))

    cost = pl.CostEstimate(
        flops=int(6 * n * c + 4 * qcat.size),
        transcendentals=int(n * c + n + 2 * qcat.size),
        bytes_accessed=int(n * c * itemsize + n * 4
                           + num_tiles * 8 * 128 * 4 + q_bytes),
    )

    kernel = functools.partial(_fused_loss_kernel, n_valid=n, tile_n=tile_n)

    out = pl.pallas_call(
        kernel,
        out_shape=jax.ShapeDtypeStruct((num_tiles, 8, 128), jnp.float32),
        grid_spec=pltpu.PrefetchScalarGridSpec(
            num_scalar_prefetch=0,
            grid=(num_tiles,),
            in_specs=[
                pl.BlockSpec((tile_n, c), lambda i: (i, 0)),
                pl.BlockSpec((tile_n, 1), lambda i: (i, 0)),
                pl.BlockSpec(qcat.shape, lambda i: (0, 0)),   # resident, DMA'd once
                pl.BlockSpec(qw.shape, lambda i: (0, 0)),     # resident, DMA'd once
            ],
            out_specs=pl.BlockSpec((None, 8, 128), lambda i: (i, 0, 0)),
        ),
        compiler_params=pltpu.CompilerParams(
            dimension_semantics=("parallel",),     # per-tile partials -> megacore OK
            vmem_limit_bytes=vmem_limit,
        ),
        cost_estimate=cost,
    )(logits, targets2d, qcat, qw)

    ce = jnp.sum(out[:, 0, 0]) / jnp.float32(n)    # mean CE over the true batch
    reg = out[0, 0, 1]                             # sum of per-module mean entropies
    return ce + jnp.float32(lam) * reg


# ----------------------------- reference (plain JAX) ---------------------------

def _reference_loss(logits, targets, q_params, lam):
    lg = logits.astype(jnp.float32)
    lse = jax.nn.logsumexp(lg, axis=-1)
    picked = jnp.take_along_axis(lg, targets[:, None].astype(jnp.int32), axis=-1)[:, 0]
    ce = jnp.mean(lse - picked)
    reg = 0.0
    for q in q_params:
        p = jax.nn.softmax(q.astype(jnp.float32), axis=0)
        h = -jnp.sum(p * jnp.log(p + 1e-8), axis=0)
        reg = reg + jnp.mean(h)
    return ce + lam * reg


# ----------------------------- main ---------------------------------------------

if __name__ == "__main__":
    key = jax.random.PRNGKey(0)
    k_logits, k_targets, k_q1, k_q2 = jax.random.split(key, 4)

    N, C = 8, 32            # batch, num classes
    logits = jax.random.normal(k_logits, (N, C), dtype=jnp.float32)
    targets = jax.random.randint(k_targets, (N,), 0, C, dtype=jnp.int32)

    # Deterministic synthetic Q parameters for two AdaptiveGroupNorm modules
    # (shape: num_groups x channels).
    q_params = [
        jax.random.normal(k_q1, (4, 16), dtype=jnp.float32),
        jax.random.normal(k_q2, (8, 32), dtype=jnp.float32),
    ]
    lam = 0.005

    loss = adaptive_group_norm_loss(logits, targets, q_params, lam=lam)
    loss = jax.block_until_ready(loss)

    ref = _reference_loss(logits, targets, q_params, lam)
    assert jnp.allclose(loss, ref, rtol=1e-4, atol=1e-4), (loss, ref)

    print("KERNEL_OK")
</pallas_src>

<mosaic_0001>
module attributes {stable_mosaic.version = 11 : i64} {
  func.func @_fused_loss_kernel(%arg0: i32, %arg1: memref<8x32xf32, #tpu.memory_space<vmem>>, %arg2: memref<8x1xi32, #tpu.memory_space<vmem>>, %arg3: memref<8x256xf32, #tpu.memory_space<vmem>>, %arg4: memref<1x256xf32, #tpu.memory_space<vmem>>, %arg5: memref<1x8x128xf32, #tpu.memory_space<vmem>>) attributes {dimension_semantics = [#tpu.dimension_semantics<parallel>], iteration_bounds = array<i64: 1>, scalar_prefetch = 0 : i64, scratch_operands = 0 : i64, tpu.core_type = #tpu.core_type<tc>, window_params = [{transform_indices = @transform_0, window_bounds = array<i64: 8, 32>}, {transform_indices = @transform_1, window_bounds = array<i64: 8, 1>}, {pipeline_mode = #tpu.pipeline_mode<synchronous>, transform_indices = @transform_2, window_bounds = array<i64: 8, 256>}, {pipeline_mode = #tpu.pipeline_mode<synchronous>, transform_indices = @transform_3, window_bounds = array<i64: 1, 256>}, {transform_indices = @transform_4, window_bounds = array<i64: 1, 8, 128>}]} {
    %c0 = arith.constant 0 : index
    %c0_0 = arith.constant 0 : index
    %0 = vector.load %arg1[%c0, %c0_0] : memref<8x32xf32, #tpu.memory_space<vmem>>, vector<8x32xf32>
    %c0_1 = arith.constant 0 : index
    %c0_2 = arith.constant 0 : index
    %1 = vector.load %arg2[%c0_1, %c0_2] : memref<8x1xi32, #tpu.memory_space<vmem>>, vector<8x1xi32>
    %2 = tpu.iota {dimensions = array<i32: 0>} : vector<8x1xi32>
    %c8_i32 = arith.constant 8 : i32
    %3 = arith.muli %arg0, %c8_i32 : i32
    %4 = vector.broadcast %3 : i32 to vector<8x1xi32>
    %5 = arith.addi %2, %4 : vector<8x1xi32>
    %c8_i32_3 = arith.constant 8 : i32
    %6 = vector.broadcast %c8_i32_3 : i32 to vector<8x1xi32>
    %7 = arith.cmpi slt, %5, %6 : vector<8x1xi32>
    %cst = arith.constant -1.000000e+30 : f32
    %8 = vector.shape_cast %7 : vector<8x1xi1> to vector<8x1xi1>
    %9 = vector.broadcast %8 : vector<8x1xi1> to vector<8x32xi1>
    %10 = vector.broadcast %cst : f32 to vector<8x32xf32>
    %11 = arith.select %9, %0, %10 : vector<8x32xi1>, vector<8x32xf32>
    %cst_4 = arith.constant dense<0xFF800000> : vector<8xf32>
    %12 = vector.multi_reduction <maximumf>, %11, %cst_4 [1] : vector<8x32xf32> to vector<8xf32>
    %13 = vector.shape_cast %12 : vector<8xf32> to vector<8x1xf32>
    %14 = vector.broadcast %13 : vector<8x1xf32> to vector<8x32xf32>
    %15 = arith.subf %11, %14 : vector<8x32xf32>
    %16 = math.exp %15 : vector<8x32xf32>
    %cst_5 = arith.constant dense<0.000000e+00> : vector<8xf32>
    %17 = vector.multi_reduction <add>, %16, %cst_5 [1] : vector<8x32xf32> to vector<8xf32>
    %18 = vector.shape_cast %17 : vector<8xf32> to vector<8x1xf32>
    %19 = tpu.iota {dimensions = array<i32: 1>} : vector<1x32xi32>
    %20 = vector.broadcast %19 : vector<1x32xi32> to vector<8x32xi32>
    %21 = vector.broadcast %1 : vector<8x1xi32> to vector<8x32xi32>
    %22 = arith.cmpi eq, %20, %21 : vector<8x32xi32>
    %cst_6 = arith.constant 0.000000e+00 : f32
    %23 = vector.broadcast %cst_6 : f32 to vector<8x32xf32>
    %24 = arith.select %22, %15, %23 : vector<8x32xi1>, vector<8x32xf32>
    %cst_7 = arith.constant dense<0.000000e+00> : vector<8xf32>
    %25 = vector.multi_reduction <add>, %24, %cst_7 [1] : vector<8x32xf32> to vector<8xf32>
    %26 = vector.shape_cast %25 : vector<8xf32> to vector<8x1xf32>
    %27 = math.log %18 : vector<8x1xf32>
    %28 = arith.subf %27, %26 : vector<8x1xf32>
    %cst_8 = arith.constant 0.000000e+00 : f32
    %29 = vector.broadcast %cst_8 : f32 to vector<8x1xf32>
    %30 = arith.select %7, %28, %29 : vector<8x1xi1>, vector<8x1xf32>
    %31 = vector.shape_cast %30 : vector<8x1xf32> to vector<1x8x1xf32>
    %cst_9 = arith.constant dense<0.000000e+00> : vector<1xf32>
    %32 = vector.multi_reduction <add>, %31, %cst_9 [1, 2] : vector<1x8x1xf32> to vector<1xf32>
    %33 = vector.shape_cast %32 : vector<1xf32> to vector<1x1x1xf32>
    %34 = vector.extract %33[0, 0, 0] : f32 from vector<1x1x1xf32>
    %35 = tpu.iota {dimensions = array<i32: 0>} : vector<8x128xi32>
    %36 = tpu.iota {dimensions = array<i32: 1>} : vector<8x128xi32>
    %c0_i32 = arith.constant 0 : i32
    %37 = vector.broadcast %c0_i32 : i32 to vector<8x128xi32>
    %38 = arith.cmpi eq, %35, %37 : vector<8x128xi32>
    %c0_i32_10 = arith.constant 0 : i32
    %39 = vector.broadcast %c0_i32_10 : i32 to vector<8x128xi32>
    %40 = arith.cmpi eq, %36, %39 : vector<8x128xi32>
    %41 = arith.andi %38, %40 : vector<8x128xi1>
    %cst_11 = arith.constant 0.000000e+00 : f32
    %42 = vector.broadcast %34 : f32 to vector<8x128xf32>
    %43 = vector.broadcast %cst_11 : f32 to vector<8x128xf32>
    %44 = arith.select %41, %42, %43 : vector<8x128xi1>, vector<8x128xf32>
    %c0_i32_12 = arith.constant 0 : i32
    %45 = arith.cmpi eq, %arg0, %c0_i32_12 : i32
    %46 = arith.extui %45 : i1 to i32
    %c0_i32_13 = arith.constant 0 : i32
    %47 = arith.cmpi ne, %46, %c0_i32_13 : i32
    scf.if %47 {
      %c0_16 = arith.constant 0 : index
      %c0_17 = arith.constant 0 : index
      %51 = vector.load %arg3[%c0_16, %c0_17] : memref<8x256xf32, #tpu.memory_space<vmem>>, vector<8x256xf32>
      %cst_18 = arith.constant dense<0xFF800000> : vector<256xf32>
      %52 = vector.multi_reduction <maximumf>, %51, %cst_18 [0] : vector<8x256xf32> to vector<256xf32>
      %53 = vector.shape_cast %52 : vector<256xf32> to vector<1x256xf32>
      %54 = vector.broadcast %53 : vector<1x256xf32> to vector<8x256xf32>
      %55 = arith.subf %51, %54 : vector<8x256xf32>
      %56 = math.exp %55 : vector<8x256xf32>
      %cst_19 = arith.constant dense<0.000000e+00> : vector<256xf32>
      %57 = vector.multi_reduction <add>, %56, %cst_19 [0] : vector<8x256xf32> to vector<256xf32>
      %58 = vector.shape_cast %57 : vector<256xf32> to vector<1x256xf32>
      %59 = vector.broadcast %58 : vector<1x256xf32> to vector<8x256xf32>
      %60 = arith.divf %56, %59 : vector<8x256xf32>
      %cst_20 = arith.constant 9.99999993E-9 : f32
      %61 = vector.broadcast %cst_20 : f32 to vector<8x256xf32>
      %62 = arith.addf %60, %61 : vector<8x256xf32>
      %63 = math.log %62 : vector<8x256xf32>
      %64 = arith.mulf %60, %63 : vector<8x256xf32>
      %cst_21 = arith.constant dense<0.000000e+00> : vector<256xf32>
      %65 = vector.multi_reduction <add>, %64, %cst_21 [0] : vector<8x256xf32> to vector<256xf32>
      %66 = vector.shape_cast %65 : vector<256xf32> to vector<1x256xf32>
      %cst_22 = arith.constant 0.000000e+00 : f32
      %67 = vector.broadcast %cst_22 : f32 to vector<1x256xf32>
      %68 = arith.subf %67, %66 : vector<1x256xf32>
      %c0_23 = arith.constant 0 : index
      %c0_24 = arith.constant 0 : index
      %69 = vector.load %arg4[%c0_23, %c0_24] : memref<1x256xf32, #tpu.memory_space<vmem>>, vector<1x256xf32>
      %70 = arith.mulf %68, %69 : vector<1x256xf32>
      %71 = vector.shape_cast %70 : vector<1x256xf32> to vector<1x1x256xf32>
      %cst_25 = arith.constant dense<0.000000e+00> : vector<1xf32>
      %72 = vector.multi_reduction <add>, %71, %cst_25 [1, 2] : vector<1x1x256xf32> to vector<1xf32>
      %73 = vector.shape_cast %72 : vector<1xf32> to vector<1x1x1xf32>
      %74 = vector.extract %73[0, 0, 0] : f32 from vector<1x1x1xf32>
      %c0_i32_26 = arith.constant 0 : i32
      %75 = vector.broadcast %c0_i32_26 : i32 to vector<8x128xi32>
      %76 = arith.cmpi eq, %35, %75 : vector<8x128xi32>
      %c1_i32 = arith.constant 1 : i32
      %77 = vector.broadcast %c1_i32 : i32 to vector<8x128xi32>
      %78 = arith.cmpi eq, %36, %77 : vector<8x128xi32>
      %79 = arith.andi %76, %78 : vector<8x128xi1>
      %80 = vector.broadcast %74 : f32 to vector<8x128xf32>
      %81 = arith.select %79, %80, %44 : vector<8x128xi1>, vector<8x128xf32>
      %c0_27 = arith.constant 0 : index
      %c0_28 = arith.constant 0 : index
      %c0_29 = arith.constant 0 : index
      %82 = vector.load %arg5[%c0_27, %c0_28, %c0_29] : memref<1x8x128xf32, #tpu.memory_space<vmem>>, vector<1x8x128xf32>
      %83 = vector.shape_cast %82 : vector<1x8x128xf32> to vector<8x128xf32>
      %84 = vector.shape_cast %81 : vector<8x128xf32> to vector<1x8x128xf32>
      tpu.vector_store %arg5[%c0_27, %c0_28, %c0_29], %84 {strides = array<i32>} : memref<1x8x128xf32, #tpu.memory_space<vmem>>, vector<1x8x128xf32>,
    } else {
    }
    %c0_i32_14 = arith.constant 0 : i32
    %48 = arith.cmpi ne, %arg0, %c0_i32_14 : i32
    %49 = arith.extui %48 : i1 to i32
    %c0_i32_15 = arith.constant 0 : i32
    %50 = arith.cmpi ne, %49, %c0_i32_15 : i32
    scf.if %50 {
      %c0_16 = arith.constant 0 : index
      %c0_17 = arith.constant 0 : index
      %c0_18 = arith.constant 0 : index
      %51 = vector.load %arg5[%c0_16, %c0_17, %c0_18] : memref<1x8x128xf32, #tpu.memory_space<vmem>>, vector<1x8x128xf32>
      %52 = vector.shape_cast %51 : vector<1x8x128xf32> to vector<8x128xf32>
      %53 = vector.shape_cast %44 : vector<8x128xf32> to vector<1x8x128xf32>
      tpu.vector_store %arg5[%c0_16, %c0_17, %c0_18], %53 {strides = array<i32>} : memref<1x8x128xf32, #tpu.memory_space<vmem>>, vector<1x8x128xf32>,
    } else {
    }
    return
  }
  func.func @transform_0(%arg0: i32) -> (i32, i32) {
    %c0_i32 = arith.constant 0 : i32
    %c0_i32_0 = arith.constant 0 : i32
    return %arg0, %c0_i32 : i32, i32
  }
  func.func @transform_1(%arg0: i32) -> (i32, i32) {
    %c0_i32 = arith.constant 0 : i32
    %c0_i32_0 = arith.constant 0 : i32
    return %arg0, %c0_i32 : i32, i32
  }
  func.func @transform_2(%arg0: i32) -> (i32, i32) {
    %c0_i32 = arith.constant 0 : i32
    %c0_i32_0 = arith.constant 0 : i32
    %c0_i32_1 = arith.constant 0 : i32
    return %c0_i32, %c0_i32_0 : i32, i32
  }
  func.func @transform_3(%arg0: i32) -> (i32, i32) {
    %c0_i32 = arith.constant 0 : i32
    %c0_i32_0 = arith.constant 0 : i32
    %c0_i32_1 = arith.constant 0 : i32
    return %c0_i32, %c0_i32_0 : i32, i32
  }
  func.func @transform_4(%arg0: i32) -> (i32, i32, i32) {
    %c0_i32 = arith.constant 0 : i32
    %c0_i32_0 = arith.constant 0 : i32
    %c0_i32_1 = arith.constant 0 : i32
    return %arg0, %c0_i32, %c0_i32_0 : i32, i32, i32
  }
}

</mosaic_0001>

<llo_original>
// kernel: tpu_custom_call.1
$region0: #{tpu_custom_call.1}
  #allocation0 [shape = 'u32[]', space=smem, size = 0x4, offset = 0x4, fixed_abs, tag = 'smem constant byte address 0x4 - core index']
  #allocation1 [shape = 'u32[144,128]{1,0:T(1,128)}', space=vmem, size = 0x12000, scoped, tag = 'internal scratch']
  %s0 = inlined_call_operand.vmem [shape: f32[8,32], index: 0, kind: input, shape index: {}]
  %s1 = inlined_call_operand.vmem [shape: s32[8,1], index: 1, kind: input, shape index: {}]
  %s2 = inlined_call_operand.hbm [shape: f32[8,256], index: 2, kind: input, shape index: {}]
  %s3 = inlined_call_operand.vmem [shape: f32[1,256], index: 3, kind: input, shape index: {}]
  %s4 = inlined_call_operand.hbm [shape: f32[1,8,128], index: 4, kind: output, shape index: {}]
  %s5 = sld [smem:[#allocation0]]
  $region38: #{tpu_custom_call.1} parent=0
    _
  %s7 = ssub.s32 1, %s5
  %s8 = scalar_select 0, %s7, %s5
  $region1: #{tpu_custom_call.1} parent=0
    #allocation2 [shape = 'u8[8192]{0}', space=vmem, size = 0x2000, scoped, tag = 'input window, operand 2, single buffered']
    #allocation3 [shape = 's32[1]{0}', space=sflag, size = 0x4, scoped, tag = 'scoped memory for tpu_custom_call.1']
    #allocation4 [shape = 's32[1]{0}', space=sflag, size = 0x4, scoped, tag = 'scoped memory for tpu_custom_call.1']
    #allocation5 [shape = 'u8[4096]{0}', space=vmem, size = 0x1000, scoped, tag = 'output window, operand 0, single buffered']
    %9 = vsyncpa [#allocation3], 0
    %10 = vsyncpa [#allocation4], 0
    // Predicated region
    $region2: #{tpu_custom_call.1} parent=1 // pred_check
      _
    $region3: #{tpu_custom_call.1} parent=1 // pred_check_branch
      %12 = sbr.rel (0) target = $region5
    $region4: #{tpu_custom_call.1} parent=1 // pred_region
      _
    $region5: #{tpu_custom_call.1} parent=1 // pred_fallthru
      _
    // Predicated region
    $region6: #{tpu_custom_call.1} parent=1 // pred_check
      _
    $region7: #{tpu_custom_call.1} parent=1 // pred_check_branch
      %14 = sbr.rel (0) target = $region9
    $region8: #{tpu_custom_call.1} parent=1 // pred_region
      _
    $region9: #{tpu_custom_call.1} parent=1 // pred_fallthru
      _
    // Predicated region
    $region10: #{tpu_custom_call.1} parent=1 // pred_check
      _
    $region11: #{tpu_custom_call.1} parent=1 // pred_check_branch
      %16 = sbr.rel (0) target = $region13
    $region12: #{tpu_custom_call.1} parent=1 // pred_region
      %s18 = ssub.s32 256, 256
      %19 = vsyncadd [#allocation3], %s18
      %s21 = sshll.u32 [#allocation2], 4
      %s22 = int_to_ptr.vmem [resolvable:$true] %s21
      %24 = dma.hbm_to_vmem [thread:$0]  %s2, 256, %s22, [#allocation3]
    $region13: #{tpu_custom_call.1} parent=1 // pred_fallthru
      _
    // Predicated region
    $region14: #{tpu_custom_call.1} parent=1 // pred_check
      _
    $region15: #{tpu_custom_call.1} parent=1 // pred_check_branch
      %26 = sbr.rel (0) target = $region17
    $region16: #{tpu_custom_call.1} parent=1 // pred_region
      _
    $region17: #{tpu_custom_call.1} parent=1 // pred_fallthru
      _
    // Predicated region
    $region18: #{tpu_custom_call.1} parent=1 // pred_check
      _
    $region19: #{tpu_custom_call.1} parent=1 // pred_check_branch
      %28 = sbr.rel (0) target = $region21
    $region20: #{tpu_custom_call.1} parent=1 // pred_region
      %29 = dma.done [#allocation3], 256
    $region21: #{tpu_custom_call.1} parent=1 // pred_fallthru
      _
    %v30 = vld [vmem:[%s0] sm:$0xff]
    %v31 = vld [vmem:[%s1] sm:$0xff]
    %v32 = vlaneseq
    %v33 = vshrl.u32 %v32, 7
    %s34 = smul.u32 0, 8
    %v35 = vstv %s34
    %v36 = vadd.s32 %v33, %v35
    %vm37 = vcmp.lt.s32.totalorder %v36, 8
    %v38 = vsel %vm37, 1, 0
    %vm39 = vcmp.eq.s32.totalorder %v38, 1
    %v40 = vsel %vm39, %v30, -1e+30
    %vm41 = vcmask 261120
    %v42 = vsel %vm41, %v40, -inf
    %43 = vmax.xlane.f32.xlu0 %v42
    %v44 = vpop.xlane.xlu0 %43
    %v45 = vsub.f32 %v40, %v44
    %v46 = vmul.f32 %v45, 1.442695
    %v47 = vpow.pop %v46
    %v48 = vsel %vm41, %v47, 0.0
    %49 = vadd.xlane.f32.xlu0 %v48
    %v50 = vpop.xlane.xlu0 %49
    %v51 = vlaneseq
    %v52 = vand.u32 %v51, 127
    %53 = vset.pattern.permute.xlu0 0
    %54 = vperm.xlu0 %53, %v31
    %v55 = vpop.permute.xlu0 %54
    %vm56 = vcmp.eq.s32.totalorder %v52, %v55
    %v57 = vsel %vm56, %v45, 0.0
    %v58 = vsel %vm41, %v57, 0.0
    %59 = vadd.xlane.f32.xlu0 %v58
    %v60 = vpop.xlane.xlu0 %59
    %v61 = vlog2.pop %v50
    %v62 = vmul.f32 %v61, 0.6931472
    %v63 = vsub.f32 %v62, %v60
    %v64 = vsel %vm37, %v63, 0.0
    %vm65 = vcmask 7168
    %v66 = vsel %vm65, %v64, 0.0
    %67 = vadd.xlane.f32.xlu0 %v66
    %v68 = vpop.xlane.xlu0 %67
    %v69 = vrot.slane %v68, 4
    %v70 = vadd.f32 %v68, %v69
    %v71 = vrot.slane %v70, 2
    %v72 = vadd.f32 %v70, %v71
    %v73 = vrot.slane %v72, 1
    %v74 = vadd.f32 %v72, %v73
    %s75 = vtos %v74
    %vm76 = vcmp.eq.s32.totalorder %v33, 0
    %vm77 = vcmp.eq.s32.totalorder %v52, 0
    %vm78 = vmand %vm76, %vm77
    %v79 = vstv %s75
    %v80 = vsel %vm78, %v79, 0.0
    %p81 = scmp.eq.s32.totalorder 0, 0
    // Predicated region
    $region22: #{tpu_custom_call.1} parent=1 // pred_check
      %p82 = pneg %p81
    $region23: #{tpu_custom_call.1} parent=1 // pred_check_branch
      %84 = sbr.rel (%p82) target = $region25
    $region24: #{tpu_custom_call.1} parent=1 // pred_region
      %v85 = vld [vmem:[#allocation2] sm:$0xff]
      %v86 = vld [vmem:[#allocation2 + $0x8] sm:$0xff]
      %v87 = vrot.slane %v85, 4
      %v88 = vmax.f32 %v85, %v87
      %v89 = vrot.slane %v88, 2
      %v90 = vmax.f32 %v88, %v89
      %v91 = vrot.slane %v90, 1
      %v92 = vmax.f32 %v90, %v91
      %v93 = vrot.slane %v86, 4
      %v94 = vmax.f32 %v86, %v93
      %v95 = vrot.slane %v94, 2
      %v96 = vmax.f32 %v94, %v95
      %v97 = vrot.slane %v96, 1
      %v98 = vmax.f32 %v96, %v97
      %v99 = vsub.f32 %v85, %v92
      %v100 = vsub.f32 %v86, %v98
      %v101 = vmul.f32 %v99, 1.442695
      %v102 = vpow.pop %v101
      %v103 = vmul.f32 %v100, 1.442695
      %v104 = vpow.pop %v103
      %v105 = vrot.slane %v102, 4
      %v106 = vadd.f32 %v102, %v105
      %v107 = vrot.slane %v106, 2
      %v108 = vadd.f32 %v106, %v107
      %v109 = vrot.slane %v108, 1
      %v110 = vadd.f32 %v108, %v109
      %v111 = vrot.slane %v104, 4
      %v112 = vadd.f32 %v104, %v111
      %v113 = vrot.slane %v112, 2
      %v114 = vadd.f32 %v112, %v113
      %v115 = vrot.slane %v114, 1
      %v116 = vadd.f32 %v114, %v115
      %v117 = vrcp.pop %v110
      %v118 = vmul.f32 %v102, %v117
      %v119 = vrcp.pop %v116
      %v120 = vmul.f32 %v104, %v119
      %v121 = vadd.f32 %v118, 1e-08
      %v122 = vadd.f32 %v120, 1e-08
      %v123 = vlog2.pop %v121
      %v124 = vmul.f32 %v123, 0.6931472
      %v125 = vlog2.pop %v122
      %v126 = vmul.f32 %v125, 0.6931472
      %v127 = vmul.f32 %v118, %v124
      %v128 = vmul.f32 %v120, %v126
      %v129 = vrot.slane %v127, 4
      %v130 = vadd.f32 %v127, %v129
      %v131 = vrot.slane %v130, 2
      %v132 = vadd.f32 %v130, %v131
      %v133 = vrot.slane %v132, 1
      %v134 = vadd.f32 %v132, %v133
      %v135 = vrot.slane %v128, 4
      %v136 = vadd.f32 %v128, %v135
      %v137 = vrot.slane %v136, 2
      %v138 = vadd.f32 %v136, %v137
      %v139 = vrot.slane %v138, 1
      %v140 = vadd.f32 %v138, %v139
      %v141 = vsub.f32 0.0, %v134
      %v142 = vsub.f32 0.0, %v140
      %v143 = vld [vmem:[%s3] sm:$0x3]
      %v145 = vlaneseq
      %v146 = vshrl.u32 %v145, 7
      %v147 = vsub.s32 0, %v146
      %v148 = vrot.slane %v143, %v147
      %v149 = vlaneseq
      %v150 = vshrl.u32 %v149, 7
      %v151 = vsub.s32 1, %v150
      %v152 = vrot.slane %v143, %v151
      %v155 = vmul.f32 %v141, %v148
      %v156 = vmul.f32 %v142, %v152
      %vm157 = vcmask 1040384
      %v158 = vsel %vm157, %v155, 0.0
      %v159 = vsel %vm157, %v156, 0.0
      %v160 = vadd.f32 %v158, %v159
      %161 = vadd.xlane.f32.xlu0 %v160
      %v162 = vpop.xlane.xlu0 %161
      %v163 = vrot.slane %v162, 4
      %v164 = vadd.f32 %v162, %v163
      %v165 = vrot.slane %v164, 2
      %v166 = vadd.f32 %v164, %v165
      %v167 = vrot.slane %v166, 1
      %v168 = vadd.f32 %v166, %v167
      %s169 = vtos %v168
      %vm170 = vcmp.eq.s32.totalorder %v52, 1
      %vm171 = vmand %vm76, %vm170
      %v172 = vstv %s169
      %v173 = vsel %vm171, %v172, %v80
      %174 = vst [vmem:[#allocation5] sm:$0xff] %v173
    $region25: #{tpu_custom_call.1} parent=1 // pred_fallthru
      _
    %p175 = scmp.ne.s32.totalorder 0, 0
    // Predicated region
    $region26: #{tpu_custom_call.1} parent=1 // pred_check
      %p176 = pneg %p175
    $region27: #{tpu_custom_call.1} parent=1 // pred_check_branch
      %178 = sbr.rel (%p176) target = $region29
    $region28: #{tpu_custom_call.1} parent=1 // pred_region
      %179 = vst [vmem:[#allocation5] sm:$0xff] %v80
    $region29: #{tpu_custom_call.1} parent=1 // pred_fallthru
      _
    // Predicated region
    $region30: #{tpu_custom_call.1} parent=1 // pred_check
      _
    $region31: #{tpu_custom_call.1} parent=1 // pred_check_branch
      %181 = sbr.rel (0) target = $region33
    $region32: #{tpu_custom_call.1} parent=1 // pred_region
      %s183 = ssub.s32 128, 128
      %184 = vsyncadd [#allocation4], %s183
      %s186 = sshll.u32 [#allocation5], 4
      %s187 = int_to_ptr.vmem [resolvable:$true] %s186
      %189 = dma.vmem_to_hbm [thread:$0]  %s187, 128, %s4, [#allocation4]
    $region33: #{tpu_custom_call.1} parent=1 // pred_fallthru
      _
    // Predicated region
    $region34: #{tpu_custom_call.1} parent=1 // pred_check
      _
    $region35: #{tpu_custom_call.1} parent=1 // pred_check_branch
      %191 = sbr.rel (0) target = $region37
    $region36: #{tpu_custom_call.1} parent=1 // pred_region
      %192 = dma.done [#allocation4], 128
    $region37: #{tpu_custom_call.1} parent=1 // pred_fallthru
      _
    %193 = vsyncpa [#allocation3], 1
    %194 = vsyncpa [#allocation4], 1

</llo_original>
